<compile_context>
chip_gen: v7x
topology: tpu7x:2x2x1
jax: 0.10.0
libtpu: 0.0.40
codegen_flags: <defaults>
</compile_context>

<pallas_src>
from typing import NamedTuple

import jax
import jax.numpy as jnp
from jax.experimental import pallas as pl
from jax.experimental.pallas import tpu as pltpu


def _round_up(x, m):
    return (x + m - 1) // m * m


def _vmem_capacity_bytes():
    """Physical VMEM capacity of the local TPU; conservative fallback = 64 MiB (v7x)."""
    try:
        return int(pltpu.get_tpu_info().vmem_capacity_bytes)
    except Exception:  # pragma: no cover - older jax / non-TPU tracing
        return 64 << 20


def _vmem_budget_bytes():
    # Leave headroom for compiler-internal scratch / semaphores.
    return int(_vmem_capacity_bytes() * 0.85)


class Qwen2MLPWeights(NamedTuple):
    """Pre-tiled Qwen2 MLP weights (built once at weight-load time)."""
    w_gate_up_chunks: jax.Array  # (nc, H, 2*tn): per-chunk [gate_j | up_j], contiguous slabs
    w_down_chunks: jax.Array     # (nc, tn, H):   per-chunk down-projection rows


def prepare_qwen2_mlp_weights(w_gate_up, w_down, *, tn=None, act_itemsize=2):
    """One-time weight re-layout (do this at weight-load time, NOT per forward).

    w_gate_up: (H, 2*I) merged gate/up projection (y = x @ w_gate_up)
    w_down:    (I, H)   down projection           (o = act @ w_down)
    """
    H, two_I = w_gate_up.shape
    I = two_I // 2
    assert w_gate_up.shape == (H, two_I)
    assert w_down.shape == (I, H)

    w_item = jnp.dtype(w_gate_up.dtype).itemsize

    if tn is None:
        # Pick the largest intermediate-chunk width whose double-buffered weight
        # slabs (fused gate|up: H*2tn, down: tn*H) fit the VMEM budget after
        # reserving room for activations at the largest default token tile.
        budget = _vmem_budget_bytes()
        tm_target = 512
        act_reserve = tm_target * (4 * H * act_itemsize + 4 * H)  # x/out dbl-buf + f32 acc
        weight_budget = max(budget - act_reserve, 6 * H * 128 * w_item)
        tn = 128
        for cand in (1024, 512, 256, 128):
            if 6 * H * cand * w_item <= weight_budget:
                tn = cand
                break
    tn = max(128, min(_round_up(tn, 128), _round_up(I, 128)))

    I_pad = _round_up(I, tn)
    nc = I_pad // tn

    w_gate = w_gate_up[:, :I]
    w_up = w_gate_up[:, I:]
    if I_pad != I:
        # Zero-padded intermediate columns/rows contribute exactly zero.
        w_gate = jnp.pad(w_gate, ((0, 0), (0, I_pad - I)))
        w_up = jnp.pad(w_up, ((0, 0), (0, I_pad - I)))
        w_down = jnp.pad(w_down, ((0, I_pad - I), (0, 0)))

    # Fuse gate|up per chunk and go chunk-major so each fetch is one contiguous DMA.
    gate_c = w_gate.reshape(H, nc, tn)
    up_c = w_up.reshape(H, nc, tn)
    w_gu_chunks = jnp.transpose(jnp.concatenate([gate_c, up_c], axis=-1), (1, 0, 2))
    w_down_chunks = w_down.reshape(nc, tn, H)

    return Qwen2MLPWeights(jnp.asarray(w_gu_chunks), jnp.asarray(w_down_chunks))


def _qwen2_mlp_kernel(x_ref, wgu_ref, wd_ref, o_ref, acc_ref):
    # x_ref:   (tm, H)      token tile, resident across the intermediate-chunk axis
    # wgu_ref: (H, 2*tn)    fused [gate | up] weight chunk
    # wd_ref:  (tn, H)      down-projection weight chunk
    # o_ref:   (tm, H)      output tile
    # acc_ref: (tm, H) f32  VMEM accumulator, persists across chunk axis
    j = pl.program_id(1)

    @pl.when(j == 0)
    def _():
        acc_ref[...] = jnp.zeros_like(acc_ref)

    # Single fused gate|up matmul: x goes through the MXU (and VMEM) once per chunk.
    gu = jnp.dot(x_ref[...], wgu_ref[...], preferred_element_type=jnp.float32)  # (tm, 2tn)
    tn = wd_ref.shape[0]
    gate = gu[:, :tn]
    up = gu[:, tn:]

    # SiluAndMul in f32 (sigmoid goes to the EUP slot).
    act = (gate * jax.nn.sigmoid(gate)) * up                                    # (tm, tn) f32

    # Partial down projection, accumulated over intermediate chunks.
    acc_ref[...] += jnp.dot(act.astype(wd_ref.dtype), wd_ref[...],
                            preferred_element_type=jnp.float32)

    @pl.when(j == pl.num_programs(1) - 1)
    def _():
        o_ref[...] = acc_ref[...].astype(o_ref.dtype)


def qwen2_mlp(hidden_states, weights: Qwen2MLPWeights, *, tm=None,
              donate_hidden_states=False, vmem_limit_bytes=None):
    """hidden_states: (T, H); weights: prepared via prepare_qwen2_mlp_weights."""
    T, H = hidden_states.shape
    w_gu, w_dn = weights.w_gate_up_chunks, weights.w_down_chunks
    nc, Hw, two_tn = w_gu.shape
    tn = two_tn // 2
    assert Hw == H and w_dn.shape == (nc, tn, H)
    I_pad = nc * tn

    act_dtype = hidden_states.dtype
    act_item = jnp.dtype(act_dtype).itemsize
    w_item = jnp.dtype(w_gu.dtype).itemsize
    sublane = {1: 32, 2: 16, 4: 8}.get(act_item, 8)

    # --- Budget-aware token-tile selection -----------------------------------
    cap = _vmem_capacity_bytes()
    budget = int(cap * 0.85)
    # Double-buffered fused gate|up slab + down slab.
    weight_bytes = 2 * (H * two_tn + tn * H) * w_item
    # Per token-row VMEM: x + out (double-buffered) + f32 accumulator.
    per_row = 4 * H * act_item + 4 * H
    if budget > weight_bytes + per_row * sublane:
        tm_cap = ((budget - weight_bytes) // per_row) // sublane * sublane
    else:
        tm_cap = sublane

    if tm is None:
        # Prefill-sized default: weights are re-streamed once per token tile, so
        # arithmetic intensity ~ tm FLOPs/byte; tm>=512 keeps v6e MXU-bound.
        tm = 512 if act_item <= 2 else 256
        if T < tm:
            # Decode / short prompts: don't pad tokens past the request.
            # (Megacore only pays off with >= 2 token tiles anyway — gate on T.)
            tm = _round_up(max(T, sublane), sublane)
    tm = _round_up(max(tm, sublane), sublane)
    tm = max(sublane, min(tm, tm_cap))

    T_pad = _round_up(T, tm)
    x = hidden_states
    if T_pad != T:
        x = jnp.pad(x, ((0, T_pad - T), (0, 0)))

    n_token_tiles = T_pad // tm
    grid = (n_token_tiles, nc)

    if vmem_limit_bytes is None:
        working = weight_bytes + tm * per_row
        vmem_limit_bytes = int(min(cap, max(working + (8 << 20), 32 << 20)))

    # Advisory cost estimate; bytes_accessed includes weight re-streaming
    # (weights are re-read from HBM once per token tile).
    cost = pl.CostEstimate(
        flops=2 * T_pad * H * (2 * I_pad) + 2 * T_pad * I_pad * H,
        transcendentals=T_pad * I_pad,
        bytes_accessed=(2 * T_pad * H * act_item
                        + n_token_tiles * (H * 2 * I_pad + I_pad * H) * w_item))

    # TokenWeave-style in-place write is opt-in; only valid when no token padding.
    io_aliases = {0: 0} if (donate_hidden_states and T_pad == T) else {}

    out = pl.pallas_call(
        _qwen2_mlp_kernel,
        out_shape=jax.ShapeDtypeStruct((T_pad, H), act_dtype),
        grid_spec=pltpu.PrefetchScalarGridSpec(
            num_scalar_prefetch=0,
            grid=grid,
            in_specs=[
                pl.BlockSpec((tm, H), lambda i, j: (i, 0)),              # token tile
                pl.BlockSpec((None, H, two_tn), lambda i, j: (j, 0, 0)),  # fused gate|up chunk
                pl.BlockSpec((None, tn, H), lambda i, j: (j, 0, 0)),      # down chunk
            ],
            out_specs=pl.BlockSpec((tm, H), lambda i, j: (i, 0)),
            scratch_shapes=[pltpu.VMEM((tm, H), jnp.float32)],
        ),
        input_output_aliases=io_aliases,
        compiler_params=pltpu.CompilerParams(
            dimension_semantics=("parallel", "arbitrary"),
            vmem_limit_bytes=vmem_limit_bytes),
        cost_estimate=cost,
    )(x, w_gu, w_dn)

    if T_pad != T:
        out = out[:T]
    return out


def _reference(hidden_states, w_gate_up, w_down):
    I = w_down.shape[0]
    x = hidden_states.astype(jnp.float32)
    gu = x @ w_gate_up.astype(jnp.float32)
    gate, up = gu[:, :I], gu[:, I:]
    act = (gate * jax.nn.sigmoid(gate)) * up
    # Match the kernel: activation is cast to the down-proj weight dtype.
    act = act.astype(w_down.dtype).astype(jnp.float32)
    return (act @ w_down.astype(jnp.float32)).astype(hidden_states.dtype)


if __name__ == "__main__":
    # Small shapes consistent with the module: tokens=20 (non-multiple, tests
    # padding), hidden=128, intermediate=256.
    T, H, I = 20, 128, 256

    key = jax.random.PRNGKey(0)
    kx, kg, kd = jax.random.split(key, 3)
    x_f32 = jax.random.normal(kx, (T, H), dtype=jnp.float32)
    wgu_f32 = 0.02 * jax.random.normal(kg, (H, 2 * I), dtype=jnp.float32)
    wd_f32 = 0.02 * jax.random.normal(kd, (I, H), dtype=jnp.float32)

    # --- f32 run with small explicit tiles: exercises token padding, multiple
    #     token tiles and multi-chunk reduction with the fused gate|up layout. ---
    w_prep_f32 = prepare_qwen2_mlp_weights(wgu_f32, wd_f32, tn=128)
    out_f32 = jax.block_until_ready(qwen2_mlp(x_f32, w_prep_f32, tm=16))
    exp_f32 = _reference(x_f32, wgu_f32, wd_f32)
    assert out_f32.shape == (T, H) and out_f32.dtype == jnp.float32
    assert jnp.allclose(out_f32, exp_f32, atol=2e-4, rtol=2e-4), "f32 mismatch"

    # --- bf16 run with default (budget-aware, production-style) tile selection. ---
    x_bf16 = x_f32.astype(jnp.bfloat16)
    wgu_bf16 = wgu_f32.astype(jnp.bfloat16)
    wd_bf16 = wd_f32.astype(jnp.bfloat16)
    w_prep_bf16 = prepare_qwen2_mlp_weights(wgu_bf16, wd_bf16)
    out_bf16 = jax.block_until_ready(qwen2_mlp(x_bf16, w_prep_bf16))
    exp_bf16 = _reference(x_bf16, wgu_bf16, wd_bf16)
    assert out_bf16.shape == (T, H) and out_bf16.dtype == jnp.bfloat16
    assert jnp.allclose(out_bf16.astype(jnp.float32),
                        exp_bf16.astype(jnp.float32),
                        atol=2e-3, rtol=2e-2), "bf16 mismatch"

    print("KERNEL_OK")
</pallas_src>

<mosaic_0001>
module attributes {stable_mosaic.version = 11 : i64} {
  func.func @_qwen2_mlp_kernel(%arg0: i32, %arg1: i32, %arg2: memref<16x128xf32, #tpu.memory_space<vmem>>, %arg3: memref<1x128x256xf32, #tpu.memory_space<vmem>>, %arg4: memref<1x128x128xf32, #tpu.memory_space<vmem>>, %arg5: memref<16x128xf32, #tpu.memory_space<vmem>>, %arg6: memref<16x128xf32, #tpu.memory_space<vmem>>) attributes {dimension_semantics = [#tpu.dimension_semantics<parallel>, #tpu.dimension_semantics<arbitrary>], iteration_bounds = array<i64: 2, 2>, scalar_prefetch = 0 : i64, scratch_operands = 1 : i64, tpu.core_type = #tpu.core_type<tc>, window_params = [{transform_indices = @transform_0, window_bounds = array<i64: 16, 128>}, {transform_indices = @transform_1, window_bounds = array<i64: 1, 128, 256>}, {transform_indices = @transform_2, window_bounds = array<i64: 1, 128, 128>}, {transform_indices = @transform_3, window_bounds = array<i64: 16, 128>}]} {
    %c0_i32 = arith.constant 0 : i32
    %0 = arith.cmpi eq, %arg1, %c0_i32 : i32
    %1 = arith.extui %0 : i1 to i32
    %c0_i32_0 = arith.constant 0 : i32
    %2 = arith.cmpi ne, %1, %c0_i32_0 : i32
    scf.if %2 {
      %cst_15 = arith.constant 0.000000e+00 : f32
      %25 = vector.broadcast %cst_15 : f32 to vector<16x128xf32>
      %c0_16 = arith.constant 0 : index
      %c0_17 = arith.constant 0 : index
      %26 = vector.load %arg6[%c0_16, %c0_17] : memref<16x128xf32, #tpu.memory_space<vmem>>, vector<16x128xf32>
      tpu.vector_store %arg6[%c0_16, %c0_17], %25 {strides = array<i32>} : memref<16x128xf32, #tpu.memory_space<vmem>>, vector<16x128xf32>,
    } else {
    }
    %c0 = arith.constant 0 : index
    %c0_1 = arith.constant 0 : index
    %3 = vector.load %arg2[%c0, %c0_1] : memref<16x128xf32, #tpu.memory_space<vmem>>, vector<16x128xf32>
    %c0_2 = arith.constant 0 : index
    %c0_3 = arith.constant 0 : index
    %c0_4 = arith.constant 0 : index
    %4 = vector.load %arg3[%c0_2, %c0_3, %c0_4] : memref<1x128x256xf32, #tpu.memory_space<vmem>>, vector<1x128x256xf32>
    %5 = vector.shape_cast %4 : vector<1x128x256xf32> to vector<128x256xf32>
    %cst = arith.constant dense<0.000000e+00> : vector<16x256xf32>
    %6 = tpu.matmul %3, %5, %cst {dimension_numbers = #tpu.dot_dimension_numbers<[1], [0], [0], [1], [0, 0, 1, 1], [], []>} : vector<16x128xf32>, vector<128x256xf32>, vector<16x256xf32> -> vector<16x256xf32>
    %7 = vector.extract_strided_slice %6 {offsets = [0, 0], sizes = [16, 128], strides = [1, 1]} : vector<16x256xf32> to vector<16x128xf32>
    %8 = vector.extract_strided_slice %6 {offsets = [0, 128], sizes = [16, 128], strides = [1, 1]} : vector<16x256xf32> to vector<16x128xf32>
    %9 = arith.negf %7 : vector<16x128xf32>
    %10 = math.exp %9 : vector<16x128xf32>
    %cst_5 = arith.constant 1.000000e+00 : f32
    %11 = vector.broadcast %cst_5 : f32 to vector<16x128xf32>
    %12 = arith.addf %11, %10 : vector<16x128xf32>
    %13 = arith.divf %11, %12 : vector<16x128xf32>
    %14 = arith.mulf %7, %13 : vector<16x128xf32>
    %15 = arith.mulf %14, %8 : vector<16x128xf32>
    %c0_6 = arith.constant 0 : index
    %c0_7 = arith.constant 0 : index
    %16 = vector.load %arg6[%c0_6, %c0_7] : memref<16x128xf32, #tpu.memory_space<vmem>>, vector<16x128xf32>
    %c0_8 = arith.constant 0 : index
    %c0_9 = arith.constant 0 : index
    %c0_10 = arith.constant 0 : index
    %17 = vector.load %arg4[%c0_8, %c0_9, %c0_10] : memref<1x128x128xf32, #tpu.memory_space<vmem>>, vector<1x128x128xf32>
    %18 = vector.shape_cast %17 : vector<1x128x128xf32> to vector<128x128xf32>
    %cst_11 = arith.constant dense<0.000000e+00> : vector<16x128xf32>
    %19 = tpu.matmul %15, %18, %cst_11 {dimension_numbers = #tpu.dot_dimension_numbers<[1], [0], [0], [1], [0, 0, 1, 1], [], []>} : vector<16x128xf32>, vector<128x128xf32>, vector<16x128xf32> -> vector<16x128xf32>
    %20 = arith.addf %16, %19 : vector<16x128xf32>
    %c0_12 = arith.constant 0 : index
    %c0_13 = arith.constant 0 : index
    %21 = vector.load %arg6[%c0_12, %c0_13] : memref<16x128xf32, #tpu.memory_space<vmem>>, vector<16x128xf32>
    tpu.vector_store %arg6[%c0_12, %c0_13], %20 {strides = array<i32>} : memref<16x128xf32, #tpu.memory_space<vmem>>, vector<16x128xf32>,
    %c1_i32 = arith.constant 1 : i32
    %22 = arith.cmpi eq, %arg1, %c1_i32 : i32
    %23 = arith.extui %22 : i1 to i32
    %c0_i32_14 = arith.constant 0 : i32
    %24 = arith.cmpi ne, %23, %c0_i32_14 : i32
    scf.if %24 {
      %c0_15 = arith.constant 0 : index
      %c0_16 = arith.constant 0 : index
      %25 = vector.load %arg6[%c0_15, %c0_16] : memref<16x128xf32, #tpu.memory_space<vmem>>, vector<16x128xf32>
      %c0_17 = arith.constant 0 : index
      %c0_18 = arith.constant 0 : index
      %26 = vector.load %arg5[%c0_17, %c0_18] : memref<16x128xf32, #tpu.memory_space<vmem>>, vector<16x128xf32>
      tpu.vector_store %arg5[%c0_17, %c0_18], %25 {strides = array<i32>} : memref<16x128xf32, #tpu.memory_space<vmem>>, vector<16x128xf32>,
    } else {
    }
    return
  }
  func.func @transform_0(%arg0: i32, %arg1: i32) -> (i32, i32) {
    %c0_i32 = arith.constant 0 : i32
    %c0_i32_0 = arith.constant 0 : i32
    return %arg0, %c0_i32 : i32, i32
  }
  func.func @transform_1(%arg0: i32, %arg1: i32) -> (i32, i32, i32) {
    %c0_i32 = arith.constant 0 : i32
    %c0_i32_0 = arith.constant 0 : i32
    %c0_i32_1 = arith.constant 0 : i32
    return %arg1, %c0_i32, %c0_i32_0 : i32, i32, i32
  }
  func.func @transform_2(%arg0: i32, %arg1: i32) -> (i32, i32, i32) {
    %c0_i32 = arith.constant 0 : i32
    %c0_i32_0 = arith.constant 0 : i32
    %c0_i32_1 = arith.constant 0 : i32
    return %arg1, %c0_i32, %c0_i32_0 : i32, i32, i32
  }
  func.func @transform_3(%arg0: i32, %arg1: i32) -> (i32, i32) {
    %c0_i32 = arith.constant 0 : i32
    %c0_i32_0 = arith.constant 0 : i32
    return %arg0, %c0_i32 : i32, i32
  }
}

</mosaic_0001>

<llo_original>
// kernel: tpu_custom_call.1
$region0: #{tpu_custom_call.1}
  #allocation0 [shape = 'u32[]', space=smem, size = 0x4, offset = 0x4, fixed_abs, tag = 'smem constant byte address 0x4 - core index']
  #allocation1 [shape = 'u32[144,128]{1,0:T(1,128)}', space=vmem, size = 0x12000, scoped, tag = 'internal scratch']
  #allocation2 [shape = 'f32[16,128]{1,0:T(8,128)}', space=vmem, size = 0x2000, scoped, tag = 'scratch operand']
  %s0 = inlined_call_operand.hbm [shape: f32[32,128], index: 0, kind: input, shape index: {}]
  %s1 = inlined_call_operand.hbm [shape: f32[2,128,256], index: 1, kind: input, shape index: {}]
  %s2 = inlined_call_operand.hbm [shape: f32[2,128,128], index: 2, kind: input, shape index: {}]
  %s3 = inlined_call_operand.hbm [shape: f32[32,128], index: 3, kind: output, shape index: {}]
  %s4 = sld [smem:[#allocation0]]
  $region65: #{tpu_custom_call.1} parent=0
    _
  %s6 = ssub.s32 1, %s4
  %s7 = scalar_select 0, %s6, %s4
  $region1: #{tpu_custom_call.1} parent=0
    #allocation3 [shape = 'u8[16384]{0}', space=vmem, size = 0x4000, scoped, tag = 'input window, operand 0']
    #allocation4 [shape = 's32[2]{0}', space=sflag, size = 0x8, scoped, tag = 'scoped memory for tpu_custom_call.1']
    #allocation5 [shape = 's32[2]{0}', space=sflag, size = 0x8, scoped, tag = 'scoped memory for tpu_custom_call.1']
    #allocation6 [shape = 'u8[262144]{0}', space=vmem, size = 0x40000, scoped, tag = 'input window, operand 1']
    #allocation7 [shape = 's32[2]{0}', space=sflag, size = 0x8, scoped, tag = 'scoped memory for tpu_custom_call.1']
    #allocation8 [shape = 'u8[131072]{0}', space=vmem, size = 0x20000, scoped, tag = 'input window, operand 2']
    #allocation9 [shape = 'u8[16384]{0}', space=vmem, size = 0x4000, scoped, tag = 'output window, operand 0']
    %8 = vsyncpa [#allocation4], 0
    %s9 = scalar_lea.sflag [#allocation4], 1
    %10 = vsyncpa %s9, 0
    %11 = vsyncpa [#allocation7], 0
    %s12 = scalar_lea.sflag [#allocation7], 1
    %13 = vsyncpa %s12, 0
    %14 = vsyncpa [#allocation5], 0
    %s15 = scalar_lea.sflag [#allocation5], 1
    %16 = vsyncpa %s15, 0
    loop: start=0, step=1, limit=6
    $region2: #{tpu_custom_call.1} parent=1 // loop_pre_header
      _
    $region3: #{tpu_custom_call.1} parent=1 // loop_header
      %s18 = sphi 0, %s22
      %p19 = scmp.ge.s32.totalorder %s18, 6
      %s25 = sphi 0, %s37
      %s26 = sphi 0, %s33
      %s27 = sphi 0, %s25
      %s28 = sphi 0, %s26
      %s29 = sphi 0, %s27
      %s30 = sphi 0, %s28
      %s40 = sphi 0, %s42
      %s43 = sphi 0, %s40
      %s44 = sphi 0, %s43
      %s60 = sphi 0, %s44
      %s66 = sphi 0, %s68
      %s69 = sphi 0, %s66
      %s70 = sphi 0, %s69
      %s86 = sphi 0, %s70
      %s92 = sphi 0, %s94
      %s95 = sphi 0, %s92
      %s96 = sphi 0, %s95
      %s112 = sphi 0, %s96
      %s118 = sphi 0, %s120
      %s121 = sphi 0, %s118
      %s122 = sphi 0, %s121
      %s138 = sphi 0, %s122
    $region4: #{tpu_custom_call.1} parent=1 // loop_header_branch
      %21 = sbr.rel (%p19) target = $region8
    $region5: #{tpu_custom_call.1} parent=1 // loop_body
      %s23 = ssub.s32 %s18, 1
      %s24 = ssub.s32 %s18, 2
      %s31 = sadd.s32 1, %s26
      %p32 = scmp.ge.s32.totalorder %s31, 2
      %s33 = scalar_select %p32, 0, %s31
      %s34 = sadd.s32 1, %s25
      %s35 = scalar_select %p32, %s34, %s25
      %p36 = scmp.ge.s32.totalorder %s35, 2
      %s37 = scalar_select %p36, 0, %s35
      %s38 = ssub.s32 %s25, %s37
      %p39 = scmp.eq.s32.totalorder %s38, 0
      %s41 = sadd.s32 %s40, 1
      %s42 = scalar_select %p39, %s40, %s41
      %p45 = pneg %p39
      %p46 = scmp.eq.s32.totalorder %s18, 3
      %p47 = por %p45, %p46
      %p48 = scmp.ne.s32.totalorder %s40, %s43
      %p49 = scmp.eq.s32.totalorder %s18, 0
      %p50 = por %p48, %p49
      %p51 = scmp.ne.s32.totalorder %s40, %s43
      %p52 = scmp.eq.s32.totalorder %s23, 3
      %p53 = por %p51, %p52
      %p54 = scmp.ne.s32.totalorder %s43, %s44
      %p55 = scmp.eq.s32.totalorder %s23, 0
      %p56 = por %p54, %p55
      %p57 = scmp.ne.s32.totalorder %s43, %s44
      %p58 = scmp.eq.s32.totalorder %s24, 3
      %p59 = por %p57, %p58
      %p61 = scmp.ne.s32.totalorder %s44, %s60
      %p62 = scmp.eq.s32.totalorder %s24, 0
      %p63 = por %p61, %p62
      %s64 = ssub.s32 %s26, %s33
      %p65 = scmp.eq.s32.totalorder %s64, 0
      %s67 = sadd.s32 %s66, 1
      %s68 = scalar_select %p65, %s66, %s67
      %p71 = pneg %p65
      %p72 = scmp.eq.s32.totalorder %s18, 3
      %p73 = por %p71, %p72
      %p74 = scmp.ne.s32.totalorder %s66, %s69
      %p75 = scmp.eq.s32.totalorder %s18, 0
      %p76 = por %p74, %p75
      %p77 = scmp.ne.s32.totalorder %s66, %s69
      %p78 = scmp.eq.s32.totalorder %s23, 3
      %p79 = por %p77, %p78
      %p80 = scmp.ne.s32.totalorder %s69, %s70
      %p81 = scmp.eq.s32.totalorder %s23, 0
      %p82 = por %p80, %p81
      %p83 = scmp.ne.s32.totalorder %s69, %s70
      %p84 = scmp.eq.s32.totalorder %s24, 3
      %p85 = por %p83, %p84
      %p87 = scmp.ne.s32.totalorder %s70, %s86
      %p88 = scmp.eq.s32.totalorder %s24, 0
      %p89 = por %p87, %p88
      %s90 = ssub.s32 %s26, %s33
      %p91 = scmp.eq.s32.totalorder %s90, 0
      %s93 = sadd.s32 %s92, 1
      %s94 = scalar_select %p91, %s92, %s93
      %p97 = pneg %p91
      %p98 = scmp.eq.s32.totalorder %s18, 3
      %p99 = por %p97, %p98
      %p100 = scmp.ne.s32.totalorder %s92, %s95
      %p101 = scmp.eq.s32.totalorder %s18, 0
      %p102 = por %p100, %p101
      %p103 = scmp.ne.s32.totalorder %s92, %s95
      %p104 = scmp.eq.s32.totalorder %s23, 3
      %p105 = por %p103, %p104
      %p106 = scmp.ne.s32.totalorder %s95, %s96
      %p107 = scmp.eq.s32.totalorder %s23, 0
      %p108 = por %p106, %p107
      %p109 = scmp.ne.s32.totalorder %s95, %s96
      %p110 = scmp.eq.s32.totalorder %s24, 3
      %p111 = por %p109, %p110
      %p113 = scmp.ne.s32.totalorder %s96, %s112
      %p114 = scmp.eq.s32.totalorder %s24, 0
      %p115 = por %p113, %p114
      %s116 = ssub.s32 %s25, %s37
      %p117 = scmp.eq.s32.totalorder %s116, 0
      %s119 = sadd.s32 %s118, 1
      %s120 = scalar_select %p117, %s118, %s119
      %p123 = pneg %p117
      %p124 = scmp.eq.s32.totalorder %s18, 3
      %p125 = por %p123, %p124
      %p126 = scmp.ne.s32.totalorder %s118, %s121
      %p127 = scmp.eq.s32.totalorder %s18, 0
      %p128 = por %p126, %p127
      %p129 = scmp.ne.s32.totalorder %s118, %s121
      %p130 = scmp.eq.s32.totalorder %s23, 3
      %p131 = por %p129, %p130
      %p132 = scmp.ne.s32.totalorder %s121, %s122
      %p133 = scmp.eq.s32.totalorder %s23, 0
      %p134 = por %p132, %p133
      %p135 = scmp.ne.s32.totalorder %s121, %s122
      %p136 = scmp.eq.s32.totalorder %s24, 3
      %p137 = por %p135, %p136
      %p139 = scmp.ne.s32.totalorder %s122, %s138
      %p140 = scmp.eq.s32.totalorder %s24, 0
      %p141 = por %p139, %p140
      %p142 = scmp.le.s32.totalorder 1, %s18
      %p143 = scmp.lt.s32.totalorder %s18, 5
      %p144 = pnand %p142, %p143
      %p145 = pneg %p144
      // Predicated region
      $region9: #{tpu_custom_call.1} parent=5 // pred_check
        _
      $region10: #{tpu_custom_call.1} parent=5 // pred_check_branch
        %147 = sbr.rel (%p144) target = $region12
      $region11: #{tpu_custom_call.1} parent=5 // pred_region
        %s148 = ssub.s32 %s18, 1
      $region12: #{tpu_custom_call.1} parent=5 // pred_fallthru
        _
      %p149 = scmp.lt.s32.totalorder %s18, 4
      // Predicated region
      $region13: #{tpu_custom_call.1} parent=5 // pred_check
        %p150 = pneg %p149
      $region14: #{tpu_custom_call.1} parent=5 // pred_check_branch
        %152 = sbr.rel (%p150) target = $region16
      $region15: #{tpu_custom_call.1} parent=5 // pred_region
        // Predicated region
        $region17: #{tpu_custom_call.1} parent=15 // pred_check
          %p153 = pneg %p50
        $region18: #{tpu_custom_call.1} parent=15 // pred_check_branch
          %155 = sbr.rel (%p153) target = $region20
        $region19: #{tpu_custom_call.1} parent=15 // pred_region
          %s156 = sand.u32 %s40, 1
          %s157 = scalar_lea.sflag [#allocation4], %s156
          %s158 = sand.u32 %s40, 1
          %s159 = smul.addr %s158, 16
          %s160 = scalar_lea.vmem [#allocation3], %s159
          %s161 = smul.u32 2, %s25
          %s163 = ssub.s32 256, 256
          %164 = vsyncadd %s157, %s163
          %s165 = smul.addr %s161, 128
          %s166 = scalar_lea.hbm %s0, %s165
          %s167 = sshll.u32 %s160, 4
          %s168 = int_to_ptr.vmem [resolvable:$true] %s167
          %173 = dma.hbm_to_vmem [thread:$0]  %s166, 256, %s168, %s157, 128, 128, 8
        $region20: #{tpu_custom_call.1} parent=15 // pred_fallthru
          _
        // Predicated region
        $region21: #{tpu_custom_call.1} parent=15 // pred_check
          %p174 = pneg %p76
        $region22: #{tpu_custom_call.1} parent=15 // pred_check_branch
          %176 = sbr.rel (%p174) target = $region24
        $region23: #{tpu_custom_call.1} parent=15 // pred_region
          %s177 = sand.u32 %s18, 1
          %s178 = scalar_lea.sflag [#allocation7], %s177
          %s179 = sand.u32 %s66, 1
          %s180 = smul.addr %s179, 256
          %s181 = scalar_lea.vmem [#allocation6], %s180
          %s183 = ssub.s32 4096, 4096
          %184 = vsyncadd %s178, %s183
          %s185 = smul.addr %s26, 32
          %s186 = smul.addr %s185, 128
          %s187 = scalar_lea.hbm %s1, %s186
          %s188 = sshll.u32 %s181, 4
          %s189 = int_to_ptr.vmem [resolvable:$true] %s188
          %194 = dma.hbm_to_vmem [thread:$0]  %s187, 4096, %s189, %s178, 256, 256, 16
        $region24: #{tpu_custom_call.1} parent=15 // pred_fallthru
          _
        // Predicated region
        $region25: #{tpu_custom_call.1} parent=15 // pred_check
          %p195 = pneg %p102
        $region26: #{tpu_custom_call.1} parent=15 // pred_check_branch
          %197 = sbr.rel (%p195) target = $region28
        $region27: #{tpu_custom_call.1} parent=15 // pred_region
          %s198 = sand.u32 %s18, 1
          %s199 = scalar_lea.sflag [#allocation7], %s198
          %s200 = sand.u32 %s92, 1
          %s201 = smul.addr %s200, 128
          %s202 = scalar_lea.vmem [#allocation8], %s201
          %s204 = ssub.s32 2048, 2048
          %205 = vsyncadd %s199, %s204
          %s206 = smul.addr %s26, 16
          %s207 = smul.addr %s206, 128
          %s208 = scalar_lea.hbm %s2, %s207
          %s209 = sshll.u32 %s202, 4
          %s210 = int_to_ptr.vmem [resolvable:$true] %s209
          %215 = dma.hbm_to_vmem [thread:$0]  %s208, 2048, %s210, %s199, 128, 128, 8
        $region28: #{tpu_custom_call.1} parent=15 // pred_fallthru
          _
      $region16: #{tpu_custom_call.1} parent=5 // pred_fallthru
        _
      %p216 = scmp.le.s32.totalorder 1, %s18
      %p217 = scmp.lt.s32.totalorder %s18, 5
      %p218 = pnand %p216, %p217
      %p219 = pneg %p218
      // Predicated region
      $region29: #{tpu_custom_call.1} parent=5 // pred_check
        _
      $region30: #{tpu_custom_call.1} parent=5 // pred_check_branch
        %221 = sbr.rel (%p218) target = $region32
      $region31: #{tpu_custom_call.1} parent=5 // pred_region
        %s222 = ssub.s32 %s18, 1
        %s223 = sand.u32 %s43, 1
        %s224 = scalar_lea.sflag [#allocation4], %s223
        %s225 = sand.u32 %s43, 1
        %s226 = smul.addr %s225, 16
        %s227 = scalar_lea.vmem [#allocation3], %s226
        // Predicated region
        $region33: #{tpu_custom_call.1} parent=31 // pred_check
          %p228 = pneg %p56
        $region34: #{tpu_custom_call.1} parent=31 // pred_check_branch
          %230 = sbr.rel (%p228) target = $region36
        $region35: #{tpu_custom_call.1} parent=31 // pred_region
          %231 = dma.done %s224, 256
        $region36: #{tpu_custom_call.1} parent=31 // pred_fallthru
          _
        %s232 = sand.u32 %s23, 1
        %s233 = scalar_lea.sflag [#allocation7], %s232
        %s234 = sand.u32 %s69, 1
        %s235 = smul.addr %s234, 256
        %s236 = scalar_lea.vmem [#allocation6], %s235
        // Predicated region
        $region37: #{tpu_custom_call.1} parent=31 // pred_check
          %p237 = pneg %p82
        $region38: #{tpu_custom_call.1} parent=31 // pred_check_branch
          %239 = sbr.rel (%p237) target = $region40
        $region39: #{tpu_custom_call.1} parent=31 // pred_region
          %240 = dma.done %s233, 4096
        $region40: #{tpu_custom_call.1} parent=31 // pred_fallthru
          _
        %s241 = sand.u32 %s23, 1
        %s242 = scalar_lea.sflag [#allocation7], %s241
        %s243 = sand.u32 %s95, 1
        %s244 = smul.addr %s243, 128
        %s245 = scalar_lea.vmem [#allocation8], %s244
        // Predicated region
        $region41: #{tpu_custom_call.1} parent=31 // pred_check
          %p246 = pneg %p108
        $region42: #{tpu_custom_call.1} parent=31 // pred_check_branch
          %248 = sbr.rel (%p246) target = $region44
        $region43: #{tpu_custom_call.1} parent=31 // pred_region
          %249 = dma.done %s242, 2048
        $region44: #{tpu_custom_call.1} parent=31 // pred_fallthru
          _
        %s250 = sand.u32 %s43, 1
        %s251 = scalar_lea.sflag [#allocation4], %s250
        %s252 = sand.u32 %s43, 1
        %s253 = smul.addr %s252, 16
        %s254 = scalar_lea.vmem [#allocation3], %s253
        %p255 = pneg %p56
        %p256 = pneg %p53
        %s257 = sand.u32 %s23, 1
        %s258 = scalar_lea.sflag [#allocation7], %s257
        %s259 = sand.u32 %s69, 1
        %s260 = smul.addr %s259, 256
        %s261 = scalar_lea.vmem [#allocation6], %s260
        %p262 = pneg %p82
        %p263 = pneg %p79
        %s264 = sand.u32 %s23, 1
        %s265 = scalar_lea.sflag [#allocation7], %s264
        %s266 = sand.u32 %s95, 1
        %s267 = smul.addr %s266, 128
        %s268 = scalar_lea.vmem [#allocation8], %s267
        %p269 = pneg %p108
        %p270 = pneg %p105
        %p271 = pneg %p134
        %p272 = pneg %p131
        %s273 = sand.u32 %s121, 1
        %s274 = scalar_lea.sflag [#allocation5], %s273
        %s275 = sand.u32 %s121, 1
        %s276 = smul.addr %s275, 16
        %s277 = scalar_lea.vmem [#allocation9], %s276
        %s278 = smul.u32 2, %s27
        %s279 = smul.u32 2, %s27
        %p280 = scmp.eq.s32.totalorder %s28, 0
        // Predicated region
        $region45: #{tpu_custom_call.1} parent=31 // pred_check
          %p281 = pneg %p280
        $region46: #{tpu_custom_call.1} parent=31 // pred_check_branch
          %283 = sbr.rel (%p281) target = $region48
        $region47: #{tpu_custom_call.1} parent=31 // pred_region
          %284 = vst [vmem:[#allocation2] sm:$0xff] 0.0
          %285 = vst [vmem:[#allocation2 + $0x8] sm:$0xff] 0.0
        $region48: #{tpu_custom_call.1} parent=31 // pred_fallthru
          _
        %v286 = vld [vmem:[%s227] sm:$0xff]
        %v287 = vld [vmem:[%s227 + $0x8] sm:$0xff]
        %v288 = vld [vmem:[%s236] sm:$0xff]
        %v289 = vld [vmem:[%s236 + $0x8] sm:$0xff]
        %v290 = vld [vmem:[%s236 + $0x10] sm:$0xff]
        %v291 = vld [vmem:[%s236 + $0x18] sm:$0xff]
        %v292 = vld [vmem:[%s236 + $0x20] sm:$0xff]
        %v293 = vld [vmem:[%s236 + $0x28] sm:$0xff]
        %v294 = vld [vmem:[%s236 + $0x30] sm:$0xff]
        %v295 = vld [vmem:[%s236 + $0x38] sm:$0xff]
        %v296 = vld [vmem:[%s236 + $0x40] sm:$0xff]
        %v297 = vld [vmem:[%s236 + $0x48] sm:$0xff]
        %v298 = vld [vmem:[%s236 + $0x50] sm:$0xff]
        %v299 = vld [vmem:[%s236 + $0x58] sm:$0xff]
        %v300 = vld [vmem:[%s236 + $0x60] sm:$0xff]
        %v301 = vld [vmem:[%s236 + $0x68] sm:$0xff]
        %v302 = vld [vmem:[%s236 + $0x70] sm:$0xff]
        %v303 = vld [vmem:[%s236 + $0x78] sm:$0xff]
        %v304 = vld [vmem:[%s236 + $0x80] sm:$0xff]
        %v305 = vld [vmem:[%s236 + $0x88] sm:$0xff]
        %v306 = vld [vmem:[%s236 + $0x90] sm:$0xff]
        %v307 = vld [vmem:[%s236 + $0x98] sm:$0xff]
        %v308 = vld [vmem:[%s236 + $0xa0] sm:$0xff]
        %v309 = vld [vmem:[%s236 + $0xa8] sm:$0xff]
        %v310 = vld [vmem:[%s236 + $0xb0] sm:$0xff]
        %v311 = vld [vmem:[%s236 + $0xb8] sm:$0xff]
        %v312 = vld [vmem:[%s236 + $0xc0] sm:$0xff]
        %v313 = vld [vmem:[%s236 + $0xc8] sm:$0xff]
        %v314 = vld [vmem:[%s236 + $0xd0] sm:$0xff]
        %v315 = vld [vmem:[%s236 + $0xd8] sm:$0xff]
        %v316 = vld [vmem:[%s236 + $0xe0] sm:$0xff]
        %v317 = vld [vmem:[%s236 + $0xe8] sm:$0xff]
        %v318 = vld [vmem:[%s236 + $0xf0] sm:$0xff]
        %v319 = vld [vmem:[%s236 + $0xf8] sm:$0xff]
        %320 = vmatprep.subr.mxu0 %v289
        %321 = vmatpush1.msra.mxu0 %v288
        %322 = vmatprep.subr.mxu0 %v291
        %323 = vmatpush1.msra.mxu0 %v290
        %324 = vmatprep.subr.mxu0 %v293
        %325 = vmatpush1.msra.mxu0 %v292
        %326 = vmatprep.subr.mxu0 %v295
        %327 = vmatpush1.msra.mxu0 %v294
        %328 = vmatprep.subr.mxu0 %v297
        %329 = vmatpush1.msra.mxu0 %v296
        %330 = vmatprep.subr.mxu0 %v299
        %331 = vmatpush1.msra.mxu0 %v298
        %332 = vmatprep.subr.mxu0 %v301
        %333 = vmatpush1.msra.mxu0 %v300
        %334 = vmatprep.subr.mxu0 %v303
        %335 = vmatpush1.msra.mxu0 %v302
        %336 = vmatprep.subr.mxu0 %v305
        %337 = vmatpush1.msra.mxu0 %v304
        %338 = vmatprep.subr.mxu0 %v307
        %339 = vmatpush1.msra.mxu0 %v306
        %340 = vmatprep.subr.mxu0 %v309
        %341 = vmatpush1.msra.mxu0 %v308
        %342 = vmatprep.subr.mxu0 %v311
        %343 = vmatpush1.msra.mxu0 %v310
        %344 = vmatprep.subr.mxu0 %v313
        %345 = vmatpush1.msra.mxu0 %v312
        %346 = vmatprep.subr.mxu0 %v315
        %347 = vmatpush1.msra.mxu0 %v314
        %348 = vmatprep.subr.mxu0 %v317
        %349 = vmatpush1.msra.mxu0 %v316
        %350 = vmatprep.subr.mxu0 %v319
        %351 = vmatpush1.msra.mxu0 %v318
        %352 = vmatprep.subr.mxu0 0.0
        %353 = vmatpush1.msra.mxu0 0.0
        %354 = vmatprep.subr.mxu0 0.0
        %355 = vmatpush1.msra.mxu0 0.0
        %356 = vmatprep.subr.mxu0 0.0
        %357 = vmatpush1.msra.mxu0 0.0
        %358 = vmatprep.subr.mxu0 0.0
        %359 = vmatpush1.msra.mxu0 0.0
        %360 = vmatprep.subr.mxu0 0.0
        %361 = vmatpush1.msra.mxu0 0.0
        %362 = vmatprep.subr.mxu0 0.0
        %363 = vmatpush1.msra.mxu0 0.0
        %364 = vmatprep.subr.mxu0 0.0
        %365 = vmatpush1.msra.mxu0 0.0
        %366 = vmatprep.subr.mxu0 0.0
        %367 = vmatpush1.msra.mxu0 0.0
        %368 = vmatprep.subr.mxu0 0.0
        %369 = vmatpush1.msra.mxu0 0.0
        %370 = vmatprep.subr.mxu0 0.0
        %371 = vmatpush1.msra.mxu0 0.0
        %372 = vmatprep.subr.mxu0 0.0
        %373 = vmatpush1.msra.mxu0 0.0
        %374 = vmatprep.subr.mxu0 0.0
        %375 = vmatpush1.msra.mxu0 0.0
        %376 = vmatprep.subr.mxu0 0.0
        %377 = vmatpush1.msra.mxu0 0.0
        %378 = vmatprep.subr.mxu0 0.0
        %379 = vmatpush1.msra.mxu0 0.0
        %380 = vmatprep.subr.mxu0 0.0
        %381 = vmatpush1.msra.mxu0 0.0
        %382 = vmatprep.subr.mxu0 0.0
        %383 = vmatpush1.msra.mxu0 0.0
        %384 = vmatprep.mubr.f32.mxu0 0.0
        %385 = vmatmul.mubr.f32.gmra.mrb[0].mxu0 %v286
        %v386 = vpop.f32.mrb[0].mxu0
        %v387 = vadd.f32 0.0, %v386
        %v388 = vpop.f32.mrb[0].mxu0
        %v389 = vadd.f32 0.0, %v388
        %390 = vmatprep.mubr.f32.mxu0 0.0
        %391 = vmatmul.mubr.f32.gmra.mrb[0].mxu0 %v287
        %v392 = vpop.f32.mrb[0].mxu0
        %v393 = vadd.f32 0.0, %v392
        %v394 = vpop.f32.mrb[0].mxu0
        %v395 = vadd.f32 0.0, %v394
        %396 = vdwg.mxu0
        %v397 = vxor.u32 %v387, 2147483648
        %v398 = vxor.u32 %v393, 2147483648
        %v399 = vmul.f32 %v397, 1.442695
        %v400 = vpow.pop %v399
        %v401 = vmul.f32 %v398, 1.442695
        %v402 = vpow.pop %v401
        %v403 = vadd.f32 %v400, 1.0
        %v404 = vadd.f32 %v402, 1.0
        %v405 = vrcp.pop %v403
        %v406 = vmul.f32 1.0, %v405
        %v407 = vrcp.pop %v404
        %v408 = vmul.f32 1.0, %v407
        %v409 = vmul.f32 %v387, %v406
        %v410 = vmul.f32 %v393, %v408
        %v411 = vmul.f32 %v409, %v389
        %v412 = vmul.f32 %v410, %v395
        %v413 = vld [vmem:[#allocation2] sm:$0xff]
        %v414 = vld [vmem:[#allocation2 + $0x8] sm:$0xff]
        %v415 = vld [vmem:[%s245] sm:$0xff]
        %v416 = vld [vmem:[%s245 + $0x8] sm:$0xff]
        %v417 = vld [vmem:[%s245 + $0x10] sm:$0xff]
        %v418 = vld [vmem:[%s245 + $0x18] sm:$0xff]
        %v419 = vld [vmem:[%s245 + $0x20] sm:$0xff]
        %v420 = vld [vmem:[%s245 + $0x28] sm:$0xff]
        %v421 = vld [vmem:[%s245 + $0x30] sm:$0xff]
        %v422 = vld [vmem:[%s245 + $0x38] sm:$0xff]
        %v423 = vld [vmem:[%s245 + $0x40] sm:$0xff]
        %v424 = vld [vmem:[%s245 + $0x48] sm:$0xff]
        %v425 = vld [vmem:[%s245 + $0x50] sm:$0xff]
        %v426 = vld [vmem:[%s245 + $0x58] sm:$0xff]
        %v427 = vld [vmem:[%s245 + $0x60] sm:$0xff]
        %v428 = vld [vmem:[%s245 + $0x68] sm:$0xff]
        %v429 = vld [vmem:[%s245 + $0x70] sm:$0xff]
        %v430 = vld [vmem:[%s245 + $0x78] sm:$0xff]
        %431 = vmatprep.subr.mxu0 0.0
        %432 = vmatpush1.msra.mxu0 %v415
        %433 = vmatprep.subr.mxu0 0.0
        %434 = vmatpush1.msra.mxu0 %v416
        %435 = vmatprep.subr.mxu0 0.0
        %436 = vmatpush1.msra.mxu0 %v417
        %437 = vmatprep.subr.mxu0 0.0
        %438 = vmatpush1.msra.mxu0 %v418
        %439 = vmatprep.subr.mxu0 0.0
        %440 = vmatpush1.msra.mxu0 %v419
        %441 = vmatprep.subr.mxu0 0.0
        %442 = vmatpush1.msra.mxu0 %v420
        %443 = vmatprep.subr.mxu0 0.0
        %444 = vmatpush1.msra.mxu0 %v421
        %445 = vmatprep.subr.mxu0 0.0
        %446 = vmatpush1.msra.mxu0 %v422
        %447 = vmatprep.subr.mxu0 0.0
        %448 = vmatpush1.msra.mxu0 %v423
        %449 = vmatprep.subr.mxu0 0.0
        %450 = vmatpush1.msra.mxu0 %v424
        %451 = vmatprep.subr.mxu0 0.0
        %452 = vmatpush1.msra.mxu0 %v425
        %453 = vmatprep.subr.mxu0 0.0
        %454 = vmatpush1.msra.mxu0 %v426
        %455 = vmatprep.subr.mxu0 0.0
        %456 = vmatpush1.msra.mxu0 %v427
        %457 = vmatprep.subr.mxu0 0.0
        %458 = vmatpush1.msra.mxu0 %v428
        %459 = vmatprep.subr.mxu0 0.0
        %460 = vmatpush1.msra.mxu0 %v429
        %461 = vmatprep.subr.mxu0 0.0
        %462 = vmatpush1.msra.mxu0 %v430
        %463 = vmatprep.subr.mxu0 0.0
        %464 = vmatpush1.msra.mxu0 0.0
        %465 = vmatprep.subr.mxu0 0.0
        %466 = vmatpush1.msra.mxu0 0.0
        %467 = vmatprep.subr.mxu0 0.0
        %468 = vmatpush1.msra.mxu0 0.0
        %469 = vmatprep.subr.mxu0 0.0
        %470 = vmatpush1.msra.mxu0 0.0
        %471 = vmatprep.subr.mxu0 0.0
        %472 = vmatpush1.msra.mxu0 0.0
        %473 = vmatprep.subr.mxu0 0.0
        %474 = vmatpush1.msra.mxu0 0.0
        %475 = vmatprep.subr.mxu0 0.0
        %476 = vmatpush1.msra.mxu0 0.0
        %477 = vmatprep.subr.mxu0 0.0
        %478 = vmatpush1.msra.mxu0 0.0
        %479 = vmatprep.subr.mxu0 0.0
        %480 = vmatpush1.msra.mxu0 0.0
        %481 = vmatprep.subr.mxu0 0.0
        %482 = vmatpush1.msra.mxu0 0.0
        %483 = vmatprep.subr.mxu0 0.0
        %484 = vmatpush1.msra.mxu0 0.0
        %485 = vmatprep.subr.mxu0 0.0
        %486 = vmatpush1.msra.mxu0 0.0
        %487 = vmatprep.subr.mxu0 0.0
        %488 = vmatpush1.msra.mxu0 0.0
        %489 = vmatprep.subr.mxu0 0.0
        %490 = vmatpush1.msra.mxu0 0.0
        %491 = vmatprep.subr.mxu0 0.0
        %492 = vmatpush1.msra.mxu0 0.0
        %493 = vmatprep.subr.mxu0 0.0
        %494 = vmatpush1.msra.mxu0 0.0
        %495 = vmatprep.mubr.f32.mxu0 0.0
        %496 = vmatmul.mubr.f32.gmra.mrb[0].mxu0 %v411
        %v497 = vpop.f32.mrb[0].mxu0
        %v498 = vadd.f32 0.0, %v497
        %v499 = vpop.f32.mrb[0].mxu0
        %500 = vmatprep.mubr.f32.mxu0 0.0
        %501 = vmatmul.mubr.f32.gmra.mrb[0].mxu0 %v412
        %v502 = vpop.f32.mrb[0].mxu0
        %v503 = vadd.f32 0.0, %v502
        %v504 = vpop.f32.mrb[0].mxu0
        %505 = vdwg.mxu0
        %v506 = vadd.f32 %v413, %v498
        %v507 = vadd.f32 %v414, %v503
        %508 = vst [vmem:[#allocation2] sm:$0xff] %v506
        %509 = vst [vmem:[#allocation2 + $0x8] sm:$0xff] %v507
        %p510 = scmp.eq.s32.totalorder %s28, 1
        // Predicated region
        $region49: #{tpu_custom_call.1} parent=31 // pred_check
          %p511 = pneg %p510
        $region50: #{tpu_custom_call.1} parent=31 // pred_check_branch
          %513 = sbr.rel (%p511) target = $region52
        $region51: #{tpu_custom_call.1} parent=31 // pred_region
          %v514 = vld [vmem:[#allocation2] sm:$0xff]
          %v515 = vld [vmem:[#allocation2 + $0x8] sm:$0xff]
          %516 = vst [vmem:[%s277] sm:$0xff] %v514
          %517 = vst [vmem:[%s277 + $0x8] sm:$0xff] %v515
        $region52: #{tpu_custom_call.1} parent=31 // pred_fallthru
          _
        %s518 = sand.u32 %s121, 1
        %s519 = scalar_lea.sflag [#allocation5], %s518
        %s520 = sand.u32 %s121, 1
        %s521 = smul.addr %s520, 16
        %s522 = scalar_lea.vmem [#allocation9], %s521
        // Predicated region
        $region53: #{tpu_custom_call.1} parent=31 // pred_check
          %p523 = pneg %p131
        $region54: #{tpu_custom_call.1} parent=31 // pred_check_branch
          %525 = sbr.rel (%p523) target = $region56
        $region55: #{tpu_custom_call.1} parent=31 // pred_region
          %s526 = smul.u32 2, %s27
          %s528 = ssub.s32 256, 256
          %529 = vsyncadd %s519, %s528
          %s530 = smul.addr %s526, 128
          %s531 = scalar_lea.hbm %s3, %s530
          %s532 = sshll.u32 %s522, 4
          %s533 = int_to_ptr.vmem [resolvable:$true] %s532
          %538 = dma.vmem_to_hbm [thread:$0]  %s533, 256, %s531, %s519, 128, 128, 8
        $region56: #{tpu_custom_call.1} parent=31 // pred_fallthru
          _
      $region32: #{tpu_custom_call.1} parent=5 // pred_fallthru
        _
      %p539 = scmp.le.s32.totalorder 2, %s18
      // Predicated region
      $region57: #{tpu_custom_call.1} parent=5 // pred_check
        %p540 = pneg %p539
      $region58: #{tpu_custom_call.1} parent=5 // pred_check_branch
        %542 = sbr.rel (%p540) target = $region60
      $region59: #{tpu_custom_call.1} parent=5 // pred_region
        %s543 = ssub.s32 %s18, 2
        // Predicated region
        $region61: #{tpu_custom_call.1} parent=59 // pred_check
          %p544 = pneg %p137
        $region62: #{tpu_custom_call.1} parent=59 // pred_check_branch
          %546 = sbr.rel (%p544) target = $region64
        $region63: #{tpu_custom_call.1} parent=59 // pred_region
          %s547 = sand.u32 %s122, 1
          %s548 = scalar_lea.sflag [#allocation5], %s547
          %s549 = sand.u32 %s122, 1
          %s550 = smul.addr %s549, 16
          %s551 = scalar_lea.vmem [#allocation9], %s550
          %552 = dma.done %s548, 256
        $region64: #{tpu_custom_call.1} parent=59 // pred_fallthru
          _
      $region60: #{tpu_custom_call.1} parent=5 // pred_fallthru
        _
    $region6: #{tpu_custom_call.1} parent=1 // loop_footer
      %s22 = sadd.s32 1, %s18
    $region7: #{tpu_custom_call.1} parent=1 // loop_footer_branch
      %17 = sbr.rel target = $region3
    $region8: #{tpu_custom_call.1} parent=1 // loop_exit
      _
    %553 = vsyncpa [#allocation4], 1
    %s554 = scalar_lea.sflag [#allocation4], 1
    %555 = vsyncpa %s554, 1
    %556 = vsyncpa [#allocation7], 1
    %s557 = scalar_lea.sflag [#allocation7], 1
    %558 = vsyncpa %s557, 1
    %559 = vsyncpa [#allocation5], 1
    %s560 = scalar_lea.sflag [#allocation5], 1
    %561 = vsyncpa %s560, 1

</llo_original>
